<compile_context>
chip_gen: v7x
topology: tpu7x:2x2x1
jax: 0.10.0
libtpu: 0.0.40
codegen_flags: <defaults>
</compile_context>

<pallas_src>
import jax
import jax.numpy as jnp
from jax.experimental import pallas as pl
from jax.experimental.pallas import tpu as pltpu

B, D, S = 2, 32, 8          # batch, features, seq
H0 = 16                     # hidden size per concurrent branch in deep step 0
O0, O1 = 8, 4               # output sizes of the two branches in deep step 1
NH = 2 * H0                 # fused hidden width after reductions[0] (= 32)
NOUT = O0 + O1              # fused output width (= 12)
LANES = 128                 # lane-dense padded width
KDIM = D * S                # contraction dim of the first (mean-folded) matmul (= 256)


def geo_kernel(x_ref, w_ref, b_ref, out_ref):
    x = x_ref[...]                                   # (TB, 256) compute dtype
    w0 = w_ref[0:KDIM, :]                            # (256, 128)  layer-0 weights (mean folded)
    w1 = w_ref[KDIM:KDIM + LANES, :]                 # (128, 128)  layer-1 weights
    b0 = b_ref[0:1, :]                               # (1, 128) f32
    b1 = b_ref[1:2, :]                               # (1, 128) f32

    # Fused deep step 0 (both branches + ReLU); mean(x, dim=2) is folded into the contraction.
    h = jnp.maximum(
        jnp.dot(x, w0, preferred_element_type=jnp.float32) + b0, 0.0)   # (TB, 128) f32

    # Fused deep step 1, emitted linearly; tanh on branch-1 columns is applied in the
    # wrapper on the sliced (B, O1) view so the EUP slot isn't the critical VLIW slot.
    z = jnp.dot(h.astype(w_ref.dtype), w1, preferred_element_type=jnp.float32) + b1
    out_ref[...] = z.astype(out_ref.dtype)           # (TB, 128) lane-dense, unmasked stores


def _pack_params(params, dtype=jnp.float32):
    """Fuse concurrent branches, fold the mean into layer 0, pad lane-dense, pack slabs."""
    (w00, b00), (w01, b01), (w10, b10), (w11, b11) = params

    # Layer 0: fuse the two concurrent Linear(D,H0) branches, fold mean(., dim=2).
    w0 = jnp.concatenate([w00, w01], axis=1) / S                  # (D, NH)
    w0 = jnp.repeat(w0, S, axis=0)                                # (D*S, NH): row d*S+s = W0[d]/S
    w0 = jnp.pad(w0, ((0, 0), (0, LANES - NH)))                   # (256, 128)

    # Layer 1: fuse the two concurrent output branches.
    w1 = jnp.concatenate([w10, w11], axis=1)                      # (NH, NOUT)
    w1 = jnp.pad(w1, ((0, LANES - NH), (0, LANES - NOUT)))        # (128, 128)

    w_slab = jnp.concatenate([w0, w1], axis=0).astype(dtype)      # (384, 128)

    # Biases stay f32 (tiny; keeps the adds in f32 regardless of compute dtype).
    b0 = jnp.pad(jnp.concatenate([b00, b01], axis=1), ((0, 0), (0, LANES - NH)))
    b1 = jnp.pad(jnp.concatenate([b10, b11], axis=1), ((0, 0), (0, LANES - NOUT)))
    b_slab = jnp.concatenate(
        [b0, b1, jnp.zeros((6, LANES), jnp.float32)], axis=0)     # (8, 128) f32

    return w_slab, b_slab


def _pick_tile(b, tb_max):
    """Sublane-legal batch tile.

    - tiny batch  -> single full-extent block (always layout-legal);
    - otherwise   -> multiple of 8, capped at tb_max, halved when needed so the grid
      has >=2 steps (keeps both v7x TensorCores busy via dimension_semantics=parallel).
    Ragged final blocks are handled by Pallas' clipped DMA (rows are independent)."""
    if b <= 8:
        return b
    tb = max(8, (min(tb_max, b) // 8) * 8)
    if b > 16 and pl.cdiv(b, tb) < 2:
        tb = max(8, (pl.cdiv(b, 2) // 8) * 8)
    return tb


def geo_brain_forward(x, params, tb=512, compute_dtype=None):
    """Returns the GeoBrainNetwork `outputs` dict: {1: [branch0_out, branch1_out]}.

    tb: max batch tile (sweep 256-2048 at production batch sizes).
    compute_dtype: defaults to x.dtype — pass bf16 activations from the producer to get
    the bf16 HBM/MXU win (a wrapper-side cast would cost its own HBM round trip)."""
    if compute_dtype is None:
        compute_dtype = x.dtype
    w_slab, b_slab = _pack_params(params, compute_dtype)

    b = x.shape[0]
    x_flat = x.reshape(b, KDIM).astype(compute_dtype)             # (B, D*S), row-major flatten
    tile = _pick_tile(b, tb)
    grid = (pl.cdiv(b, tile),)                                    # no wrapper-side batch pad

    out = pl.pallas_call(
        geo_kernel,
        out_shape=jax.ShapeDtypeStruct((b, LANES), compute_dtype),
        grid_spec=pltpu.PrefetchScalarGridSpec(
            num_scalar_prefetch=0,
            grid=grid,
            in_specs=[
                pl.BlockSpec((tile, KDIM), lambda i: (i, 0)),             # streamed activations
                pl.BlockSpec((KDIM + LANES, LANES), lambda i: (0, 0)),    # resident fused weights
                pl.BlockSpec((8, LANES), lambda i: (0, 0)),               # resident fused biases
            ],
            out_specs=pl.BlockSpec((tile, LANES), lambda i: (i, 0)),
        ),
        compiler_params=pltpu.CompilerParams(
            dimension_semantics=("parallel",)),
    )(x_flat, w_slab, b_slab)

    # Epilogue on the sliced columns only (4 lanes of tanh instead of 128*TB in-kernel).
    y0 = out[:, :O0]
    y1 = jnp.tanh(out[:, O0:O0 + O1])
    return {1: [y0, y1]}


def geo_brain_reference(x, params):
    """Pure-JAX reference mirroring the PyTorch forward semantics."""
    (w00, b00), (w01, b01), (w10, b10), (w11, b11) = params
    xm = jnp.mean(x, axis=2)
    h0 = jnp.maximum(xm @ w00 + b00, 0.0)
    h1 = jnp.maximum(xm @ w01 + b01, 0.0)
    x1 = jnp.concatenate([h0, h1], axis=1)
    y0 = x1 @ w10 + b10
    y1 = jnp.tanh(x1 @ w11 + b11)
    return {1: [y0, y1]}


def init_params(key):
    ks = jax.random.split(key, 8)
    # Weights stored as (in, out); mathematically equivalent to PyTorch's (out, in)^T.
    w00 = jax.random.normal(ks[0], (D, H0), jnp.float32) * 0.1
    b00 = jax.random.normal(ks[1], (1, H0), jnp.float32) * 0.1
    w01 = jax.random.normal(ks[2], (D, H0), jnp.float32) * 0.1
    b01 = jax.random.normal(ks[3], (1, H0), jnp.float32) * 0.1
    w10 = jax.random.normal(ks[4], (2 * H0, O0), jnp.float32) * 0.1
    b10 = jax.random.normal(ks[5], (1, O0), jnp.float32) * 0.1
    w11 = jax.random.normal(ks[6], (2 * H0, O1), jnp.float32) * 0.1
    b11 = jax.random.normal(ks[7], (1, O1), jnp.float32) * 0.1
    return (w00, b00), (w01, b01), (w10, b10), (w11, b11)


if __name__ == "__main__":
    root = jax.random.PRNGKey(0)
    k_x, k_p = jax.random.split(root)
    x = jax.random.normal(k_x, (B, D, S), jnp.float32)
    params = init_params(k_p)
    ref = geo_brain_reference(x, params)

    # f32 path: strict check against the f32 reference.
    outputs = geo_brain_forward(x, params)
    jax.block_until_ready(outputs)
    for got, want in zip(outputs[1], ref[1]):
        assert got.shape == want.shape and got.dtype == want.dtype
        assert jnp.allclose(got, want, atol=1e-5, rtol=1e-5)

    # bf16 path (producer delivers bf16 at production scale): relaxed tolerance.
    x_bf16 = x.astype(jnp.bfloat16)
    outputs_bf16 = geo_brain_forward(x_bf16, params)
    jax.block_until_ready(outputs_bf16)
    for got, want in zip(outputs_bf16[1], ref[1]):
        assert got.shape == want.shape
        assert jnp.allclose(got.astype(jnp.float32), want, atol=2e-2, rtol=5e-2)

    print("KERNEL_OK")
</pallas_src>

<mosaic_0001>
module attributes {stable_mosaic.version = 11 : i64} {
  func.func @geo_kernel(%arg0: i32, %arg1: memref<2x256xf32, #tpu.memory_space<vmem>>, %arg2: memref<384x128xf32, #tpu.memory_space<vmem>>, %arg3: memref<8x128xf32, #tpu.memory_space<vmem>>, %arg4: memref<2x128xf32, #tpu.memory_space<vmem>>) attributes {dimension_semantics = [#tpu.dimension_semantics<parallel>], iteration_bounds = array<i64: 1>, scalar_prefetch = 0 : i64, scratch_operands = 0 : i64, tpu.core_type = #tpu.core_type<tc>, window_params = [{transform_indices = @transform_0, window_bounds = array<i64: 2, 256>}, {pipeline_mode = #tpu.pipeline_mode<synchronous>, transform_indices = @transform_1, window_bounds = array<i64: 384, 128>}, {pipeline_mode = #tpu.pipeline_mode<synchronous>, transform_indices = @transform_2, window_bounds = array<i64: 8, 128>}, {transform_indices = @transform_3, window_bounds = array<i64: 2, 128>}]} {
    %c0 = arith.constant 0 : index
    %c0_0 = arith.constant 0 : index
    %0 = vector.load %arg1[%c0, %c0_0] : memref<2x256xf32, #tpu.memory_space<vmem>>, vector<2x256xf32>
    %c0_1 = arith.constant 0 : index
    %c0_2 = arith.constant 0 : index
    %1 = vector.load %arg2[%c0_1, %c0_2] : memref<384x128xf32, #tpu.memory_space<vmem>>, vector<256x128xf32>
    %c256 = arith.constant 256 : index
    %c0_3 = arith.constant 0 : index
    %2 = vector.load %arg2[%c256, %c0_3] : memref<384x128xf32, #tpu.memory_space<vmem>>, vector<128x128xf32>
    %c0_4 = arith.constant 0 : index
    %c0_5 = arith.constant 0 : index
    %3 = vector.load %arg3[%c0_4, %c0_5] : memref<8x128xf32, #tpu.memory_space<vmem>>, vector<1x128xf32>
    %c1 = arith.constant 1 : index
    %c0_6 = arith.constant 0 : index
    %4 = vector.load %arg3[%c1, %c0_6] : memref<8x128xf32, #tpu.memory_space<vmem>>, vector<1x128xf32>
    %cst = arith.constant dense<0.000000e+00> : vector<2x128xf32>
    %5 = tpu.matmul %0, %1, %cst {dimension_numbers = #tpu.dot_dimension_numbers<[1], [0], [0], [1], [0, 0, 1, 1], [], []>} : vector<2x256xf32>, vector<256x128xf32>, vector<2x128xf32> -> vector<2x128xf32>
    %6 = vector.broadcast %3 : vector<1x128xf32> to vector<2x128xf32>
    %7 = arith.addf %5, %6 : vector<2x128xf32>
    %cst_7 = arith.constant 0.000000e+00 : f32
    %8 = vector.broadcast %cst_7 : f32 to vector<2x128xf32>
    %9 = arith.maximumf %7, %8 : vector<2x128xf32>
    %cst_8 = arith.constant dense<0.000000e+00> : vector<2x128xf32>
    %10 = tpu.matmul %9, %2, %cst_8 {dimension_numbers = #tpu.dot_dimension_numbers<[1], [0], [0], [1], [0, 0, 1, 1], [], []>} : vector<2x128xf32>, vector<128x128xf32>, vector<2x128xf32> -> vector<2x128xf32>
    %11 = vector.broadcast %4 : vector<1x128xf32> to vector<2x128xf32>
    %12 = arith.addf %10, %11 : vector<2x128xf32>
    %c0_9 = arith.constant 0 : index
    %c0_10 = arith.constant 0 : index
    %13 = vector.load %arg4[%c0_9, %c0_10] : memref<2x128xf32, #tpu.memory_space<vmem>>, vector<2x128xf32>
    tpu.vector_store %arg4[%c0_9, %c0_10], %12 {strides = array<i32>} : memref<2x128xf32, #tpu.memory_space<vmem>>, vector<2x128xf32>,
    return
  }
  func.func @transform_0(%arg0: i32) -> (i32, i32) {
    %c0_i32 = arith.constant 0 : i32
    %c0_i32_0 = arith.constant 0 : i32
    return %arg0, %c0_i32 : i32, i32
  }
  func.func @transform_1(%arg0: i32) -> (i32, i32) {
    %c0_i32 = arith.constant 0 : i32
    %c0_i32_0 = arith.constant 0 : i32
    %c0_i32_1 = arith.constant 0 : i32
    return %c0_i32, %c0_i32_0 : i32, i32
  }
  func.func @transform_2(%arg0: i32) -> (i32, i32) {
    %c0_i32 = arith.constant 0 : i32
    %c0_i32_0 = arith.constant 0 : i32
    %c0_i32_1 = arith.constant 0 : i32
    return %c0_i32, %c0_i32_0 : i32, i32
  }
  func.func @transform_3(%arg0: i32) -> (i32, i32) {
    %c0_i32 = arith.constant 0 : i32
    %c0_i32_0 = arith.constant 0 : i32
    return %arg0, %c0_i32 : i32, i32
  }
}

</mosaic_0001>

<llo_original>
// kernel: tpu_custom_call.1
$region0: #{tpu_custom_call.1}
  #allocation0 [shape = 'u32[]', space=smem, size = 0x4, offset = 0x4, fixed_abs, tag = 'smem constant byte address 0x4 - core index']
  #allocation1 [shape = 'u32[144,128]{1,0:T(1,128)}', space=vmem, size = 0x12000, scoped, tag = 'internal scratch']
  %s0 = inlined_call_operand.hbm [shape: f32[2,256], index: 0, kind: input, shape index: {}]
  %s1 = inlined_call_operand.hbm [shape: f32[384,128], index: 1, kind: input, shape index: {}]
  %s2 = inlined_call_operand.hbm [shape: f32[8,128], index: 2, kind: input, shape index: {}]
  %s3 = inlined_call_operand.hbm [shape: f32[2,128], index: 3, kind: output, shape index: {}]
  %s4 = sld [smem:[#allocation0]]
  $region34: #{tpu_custom_call.1} parent=0
    _
  %s6 = ssub.s32 1, %s4
  %s7 = scalar_select 0, %s6, %s4
  $region1: #{tpu_custom_call.1} parent=0
    #allocation2 [shape = 'u8[2048]{0}', space=vmem, size = 0x800, scoped, tag = 'input window, operand 0, single buffered']
    #allocation3 [shape = 's32[1]{0}', space=sflag, size = 0x4, scoped, tag = 'scoped memory for tpu_custom_call.1']
    #allocation4 [shape = 's32[1]{0}', space=sflag, size = 0x4, scoped, tag = 'scoped memory for tpu_custom_call.1']
    #allocation5 [shape = 'u8[196608]{0}', space=vmem, size = 0x30000, scoped, tag = 'input window, operand 1, single buffered']
    #allocation6 [shape = 's32[1]{0}', space=sflag, size = 0x4, scoped, tag = 'scoped memory for tpu_custom_call.1']
    #allocation7 [shape = 'u8[4096]{0}', space=vmem, size = 0x1000, scoped, tag = 'input window, operand 2, single buffered']
    #allocation8 [shape = 'u8[1024]{0}', space=vmem, size = 0x400, scoped, tag = 'output window, operand 0, single buffered']
    %8 = vsyncpa [#allocation3], 0
    %9 = vsyncpa [#allocation6], 0
    %10 = vsyncpa [#allocation4], 0
    // Predicated region
    $region2: #{tpu_custom_call.1} parent=1 // pred_check
      _
    $region3: #{tpu_custom_call.1} parent=1 // pred_check_branch
      %12 = sbr.rel (0) target = $region5
    $region4: #{tpu_custom_call.1} parent=1 // pred_region
      %s14 = ssub.s32 64, 64
      %15 = vsyncadd [#allocation3], %s14
      %s17 = sshll.u32 [#allocation2], 4
      %s18 = int_to_ptr.vmem [resolvable:$true] %s17
      %20 = dma.hbm_to_vmem [thread:$0]  %s0, 64, %s18, [#allocation3]
    $region5: #{tpu_custom_call.1} parent=1 // pred_fallthru
      _
    // Predicated region
    $region6: #{tpu_custom_call.1} parent=1 // pred_check
      _
    $region7: #{tpu_custom_call.1} parent=1 // pred_check_branch
      %22 = sbr.rel (0) target = $region9
    $region8: #{tpu_custom_call.1} parent=1 // pred_region
      %s24 = ssub.s32 6144, 6144
      %25 = vsyncadd [#allocation6], %s24
      %s26 = sshll.u32 [#allocation5], 4
      %s27 = int_to_ptr.vmem [resolvable:$true] %s26
      %32 = dma.hbm_to_vmem [thread:$0]  %s1, 6144, %s27, [#allocation6], 128, 128, 8
    $region9: #{tpu_custom_call.1} parent=1 // pred_fallthru
      _
    // Predicated region
    $region10: #{tpu_custom_call.1} parent=1 // pred_check
      _
    $region11: #{tpu_custom_call.1} parent=1 // pred_check_branch
      %34 = sbr.rel (0) target = $region13
    $region12: #{tpu_custom_call.1} parent=1 // pred_region
      %s36 = ssub.s32 128, 128
      %37 = vsyncadd [#allocation6], %s36
      %s39 = sshll.u32 [#allocation7], 4
      %s40 = int_to_ptr.vmem [resolvable:$true] %s39
      %42 = dma.hbm_to_vmem [thread:$0]  %s2, 128, %s40, [#allocation6]
    $region13: #{tpu_custom_call.1} parent=1 // pred_fallthru
      _
    // Predicated region
    $region14: #{tpu_custom_call.1} parent=1 // pred_check
      _
    $region15: #{tpu_custom_call.1} parent=1 // pred_check_branch
      %44 = sbr.rel (0) target = $region17
    $region16: #{tpu_custom_call.1} parent=1 // pred_region
      %45 = dma.done [#allocation3], 64
    $region17: #{tpu_custom_call.1} parent=1 // pred_fallthru
      _
    // Predicated region
    $region18: #{tpu_custom_call.1} parent=1 // pred_check
      _
    $region19: #{tpu_custom_call.1} parent=1 // pred_check_branch
      %47 = sbr.rel (0) target = $region21
    $region20: #{tpu_custom_call.1} parent=1 // pred_region
      %48 = dma.done [#allocation6], 6144
    $region21: #{tpu_custom_call.1} parent=1 // pred_fallthru
      _
    // Predicated region
    $region22: #{tpu_custom_call.1} parent=1 // pred_check
      _
    $region23: #{tpu_custom_call.1} parent=1 // pred_check_branch
      %50 = sbr.rel (0) target = $region25
    $region24: #{tpu_custom_call.1} parent=1 // pred_region
      %51 = dma.done [#allocation6], 128
    $region25: #{tpu_custom_call.1} parent=1 // pred_fallthru
      _
    %v52 = vld [vmem:[#allocation2] sm:$0xf]
    %v53 = vld [vmem:[#allocation5] sm:$0xff]
    %v54 = vld [vmem:[#allocation5 + $0x8] sm:$0xff]
    %v55 = vld [vmem:[#allocation5 + $0x10] sm:$0xff]
    %v56 = vld [vmem:[#allocation5 + $0x18] sm:$0xff]
    %v57 = vld [vmem:[#allocation5 + $0x20] sm:$0xff]
    %v58 = vld [vmem:[#allocation5 + $0x28] sm:$0xff]
    %v59 = vld [vmem:[#allocation5 + $0x30] sm:$0xff]
    %v60 = vld [vmem:[#allocation5 + $0x38] sm:$0xff]
    %v61 = vld [vmem:[#allocation5 + $0x40] sm:$0xff]
    %v62 = vld [vmem:[#allocation5 + $0x48] sm:$0xff]
    %v63 = vld [vmem:[#allocation5 + $0x50] sm:$0xff]
    %v64 = vld [vmem:[#allocation5 + $0x58] sm:$0xff]
    %v65 = vld [vmem:[#allocation5 + $0x60] sm:$0xff]
    %v66 = vld [vmem:[#allocation5 + $0x68] sm:$0xff]
    %v67 = vld [vmem:[#allocation5 + $0x70] sm:$0xff]
    %v68 = vld [vmem:[#allocation5 + $0x78] sm:$0xff]
    %v69 = vld [vmem:[#allocation5 + $0x80] sm:$0xff]
    %v70 = vld [vmem:[#allocation5 + $0x88] sm:$0xff]
    %v71 = vld [vmem:[#allocation5 + $0x90] sm:$0xff]
    %v72 = vld [vmem:[#allocation5 + $0x98] sm:$0xff]
    %v73 = vld [vmem:[#allocation5 + $0xa0] sm:$0xff]
    %v74 = vld [vmem:[#allocation5 + $0xa8] sm:$0xff]
    %v75 = vld [vmem:[#allocation5 + $0xb0] sm:$0xff]
    %v76 = vld [vmem:[#allocation5 + $0xb8] sm:$0xff]
    %v77 = vld [vmem:[#allocation5 + $0xc0] sm:$0xff]
    %v78 = vld [vmem:[#allocation5 + $0xc8] sm:$0xff]
    %v79 = vld [vmem:[#allocation5 + $0xd0] sm:$0xff]
    %v80 = vld [vmem:[#allocation5 + $0xd8] sm:$0xff]
    %v81 = vld [vmem:[#allocation5 + $0xe0] sm:$0xff]
    %v82 = vld [vmem:[#allocation5 + $0xe8] sm:$0xff]
    %v83 = vld [vmem:[#allocation5 + $0xf0] sm:$0xff]
    %v84 = vld [vmem:[#allocation5 + $0xf8] sm:$0xff]
    %v85 = vld [vmem:[#allocation5 + $0x100] sm:$0xff]
    %v86 = vld [vmem:[#allocation5 + $0x108] sm:$0xff]
    %v87 = vld [vmem:[#allocation5 + $0x110] sm:$0xff]
    %v88 = vld [vmem:[#allocation5 + $0x118] sm:$0xff]
    %v89 = vld [vmem:[#allocation5 + $0x120] sm:$0xff]
    %v90 = vld [vmem:[#allocation5 + $0x128] sm:$0xff]
    %v91 = vld [vmem:[#allocation5 + $0x130] sm:$0xff]
    %v92 = vld [vmem:[#allocation5 + $0x138] sm:$0xff]
    %v93 = vld [vmem:[#allocation5 + $0x140] sm:$0xff]
    %v94 = vld [vmem:[#allocation5 + $0x148] sm:$0xff]
    %v95 = vld [vmem:[#allocation5 + $0x150] sm:$0xff]
    %v96 = vld [vmem:[#allocation5 + $0x158] sm:$0xff]
    %v97 = vld [vmem:[#allocation5 + $0x160] sm:$0xff]
    %v98 = vld [vmem:[#allocation5 + $0x168] sm:$0xff]
    %v99 = vld [vmem:[#allocation5 + $0x170] sm:$0xff]
    %v100 = vld [vmem:[#allocation5 + $0x178] sm:$0xff]
    %v101 = vld [vmem:[#allocation7] sm:$0x1]
    %v102 = vld [vmem:[#allocation7 + $0x1] sm:$0x1]
    %v103 = vlaneseq
    %v104 = vshrl.u32 %v103, 7
    %v105 = vsub.s32 0, %v104
    %v106 = vrot.slane %v101, %v105
    %v109 = vunpack.c.l.s4 1983009808
    %v110 = vunpack.c.0.s8 %v109
    %v111 = vlaneseq
    %v112 = vshrl.u32 %v111, 7
    %v113 = vsub.s32 %v110, %v112
    %v114 = vrot.slane %v52, %v113
    %v115 = vcombine.high %v114, %v114
    %118 = vmatprep.subr.mxu0 0.0
    %119 = vmatpush1.msra.mxu0 %v53
    %120 = vmatprep.subr.mxu0 0.0
    %121 = vmatpush1.msra.mxu0 %v54
    %122 = vmatprep.subr.mxu0 0.0
    %123 = vmatpush1.msra.mxu0 %v55
    %124 = vmatprep.subr.mxu0 0.0
    %125 = vmatpush1.msra.mxu0 %v56
    %126 = vmatprep.subr.mxu0 0.0
    %127 = vmatpush1.msra.mxu0 %v57
    %128 = vmatprep.subr.mxu0 0.0
    %129 = vmatpush1.msra.mxu0 %v58
    %130 = vmatprep.subr.mxu0 0.0
    %131 = vmatpush1.msra.mxu0 %v59
    %132 = vmatprep.subr.mxu0 0.0
    %133 = vmatpush1.msra.mxu0 %v60
    %134 = vmatprep.subr.mxu0 0.0
    %135 = vmatpush1.msra.mxu0 %v61
    %136 = vmatprep.subr.mxu0 0.0
    %137 = vmatpush1.msra.mxu0 %v62
    %138 = vmatprep.subr.mxu0 0.0
    %139 = vmatpush1.msra.mxu0 %v63
    %140 = vmatprep.subr.mxu0 0.0
    %141 = vmatpush1.msra.mxu0 %v64
    %142 = vmatprep.subr.mxu0 0.0
    %143 = vmatpush1.msra.mxu0 %v65
    %144 = vmatprep.subr.mxu0 0.0
    %145 = vmatpush1.msra.mxu0 %v66
    %146 = vmatprep.subr.mxu0 0.0
    %147 = vmatpush1.msra.mxu0 %v67
    %148 = vmatprep.subr.mxu0 0.0
    %149 = vmatpush1.msra.mxu0 %v68
    %150 = vmatprep.subr.mxu0 0.0
    %151 = vmatpush1.msra.mxu0 %v69
    %152 = vmatprep.subr.mxu0 0.0
    %153 = vmatpush1.msra.mxu0 %v70
    %154 = vmatprep.subr.mxu0 0.0
    %155 = vmatpush1.msra.mxu0 %v71
    %156 = vmatprep.subr.mxu0 0.0
    %157 = vmatpush1.msra.mxu0 %v72
    %158 = vmatprep.subr.mxu0 0.0
    %159 = vmatpush1.msra.mxu0 %v73
    %160 = vmatprep.subr.mxu0 0.0
    %161 = vmatpush1.msra.mxu0 %v74
    %162 = vmatprep.subr.mxu0 0.0
    %163 = vmatpush1.msra.mxu0 %v75
    %164 = vmatprep.subr.mxu0 0.0
    %165 = vmatpush1.msra.mxu0 %v76
    %166 = vmatprep.subr.mxu0 0.0
    %167 = vmatpush1.msra.mxu0 %v77
    %168 = vmatprep.subr.mxu0 0.0
    %169 = vmatpush1.msra.mxu0 %v78
    %170 = vmatprep.subr.mxu0 0.0
    %171 = vmatpush1.msra.mxu0 %v79
    %172 = vmatprep.subr.mxu0 0.0
    %173 = vmatpush1.msra.mxu0 %v80
    %174 = vmatprep.subr.mxu0 0.0
    %175 = vmatpush1.msra.mxu0 %v81
    %176 = vmatprep.subr.mxu0 0.0
    %177 = vmatpush1.msra.mxu0 %v82
    %178 = vmatprep.subr.mxu0 0.0
    %179 = vmatpush1.msra.mxu0 %v83
    %180 = vmatprep.subr.mxu0 0.0
    %181 = vmatpush1.msra.mxu0 %v84
    %182 = vmatprep.mubr.f32.mxu0 %v115
    %183 = vmatmul.mubr.f32.gmra.mrb[0].mxu0 %v114
    %v184 = vpop.f32.mrb[0].mxu0
    %v185 = vadd.f32 %v106, %v184
    %v186 = vpop.f32.mrb[0].mxu0
    %187 = vdwg.mxu0
    %v188 = vmax.f32 %v185, 0.0
    %v189 = vlaneseq
    %v190 = vshrl.u32 %v189, 7
    %v191 = vsub.s32 0, %v190
    %v192 = vrot.slane %v102, %v191
    %193 = vmatprep.subr.mxu0 0.0
    %194 = vmatpush1.msra.mxu0 %v85
    %195 = vmatprep.subr.mxu0 0.0
    %196 = vmatpush1.msra.mxu0 %v86
    %197 = vmatprep.subr.mxu0 0.0
    %198 = vmatpush1.msra.mxu0 %v87
    %199 = vmatprep.subr.mxu0 0.0
    %200 = vmatpush1.msra.mxu0 %v88
    %201 = vmatprep.subr.mxu0 0.0
    %202 = vmatpush1.msra.mxu0 %v89
    %203 = vmatprep.subr.mxu0 0.0
    %204 = vmatpush1.msra.mxu0 %v90
    %205 = vmatprep.subr.mxu0 0.0
    %206 = vmatpush1.msra.mxu0 %v91
    %207 = vmatprep.subr.mxu0 0.0
    %208 = vmatpush1.msra.mxu0 %v92
    %209 = vmatprep.subr.mxu0 0.0
    %210 = vmatpush1.msra.mxu0 %v93
    %211 = vmatprep.subr.mxu0 0.0
    %212 = vmatpush1.msra.mxu0 %v94
    %213 = vmatprep.subr.mxu0 0.0
    %214 = vmatpush1.msra.mxu0 %v95
    %215 = vmatprep.subr.mxu0 0.0
    %216 = vmatpush1.msra.mxu0 %v96
    %217 = vmatprep.subr.mxu0 0.0
    %218 = vmatpush1.msra.mxu0 %v97
    %219 = vmatprep.subr.mxu0 0.0
    %220 = vmatpush1.msra.mxu0 %v98
    %221 = vmatprep.subr.mxu0 0.0
    %222 = vmatpush1.msra.mxu0 %v99
    %223 = vmatprep.subr.mxu0 0.0
    %224 = vmatpush1.msra.mxu0 %v100
    %225 = vmatprep.subr.mxu0 0.0
    %226 = vmatpush1.msra.mxu0 0.0
    %227 = vmatprep.subr.mxu0 0.0
    %228 = vmatpush1.msra.mxu0 0.0
    %229 = vmatprep.subr.mxu0 0.0
    %230 = vmatpush1.msra.mxu0 0.0
    %231 = vmatprep.subr.mxu0 0.0
    %232 = vmatpush1.msra.mxu0 0.0
    %233 = vmatprep.subr.mxu0 0.0
    %234 = vmatpush1.msra.mxu0 0.0
    %235 = vmatprep.subr.mxu0 0.0
    %236 = vmatpush1.msra.mxu0 0.0
    %237 = vmatprep.subr.mxu0 0.0
    %238 = vmatpush1.msra.mxu0 0.0
    %239 = vmatprep.subr.mxu0 0.0
    %240 = vmatpush1.msra.mxu0 0.0
    %241 = vmatprep.subr.mxu0 0.0
    %242 = vmatpush1.msra.mxu0 0.0
    %243 = vmatprep.subr.mxu0 0.0
    %244 = vmatpush1.msra.mxu0 0.0
    %245 = vmatprep.subr.mxu0 0.0
    %246 = vmatpush1.msra.mxu0 0.0
    %247 = vmatprep.subr.mxu0 0.0
    %248 = vmatpush1.msra.mxu0 0.0
    %249 = vmatprep.subr.mxu0 0.0
    %250 = vmatpush1.msra.mxu0 0.0
    %251 = vmatprep.subr.mxu0 0.0
    %252 = vmatpush1.msra.mxu0 0.0
    %253 = vmatprep.subr.mxu0 0.0
    %254 = vmatpush1.msra.mxu0 0.0
    %255 = vmatprep.subr.mxu0 0.0
    %256 = vmatpush1.msra.mxu0 0.0
    %257 = vmatprep.mubr.f32.mxu0 0.0
    %258 = vmatmul.mubr.f32.gmra.mrb[0].mxu0 %v188
    %v259 = vpop.f32.mrb[0].mxu0
    %v260 = vadd.f32 %v192, %v259
    %v261 = vpop.f32.mrb[0].mxu0
    %262 = vdwg.mxu0
    %263 = vst [vmem:[#allocation8] sm:$0x3] %v260
    // Predicated region
    $region26: #{tpu_custom_call.1} parent=1 // pred_check
      _
    $region27: #{tpu_custom_call.1} parent=1 // pred_check_branch
      %265 = sbr.rel (0) target = $region29
    $region28: #{tpu_custom_call.1} parent=1 // pred_region
      %s267 = ssub.s32 32, 32
      %268 = vsyncadd [#allocation4], %s267
      %s270 = sshll.u32 [#allocation8], 4
      %s271 = int_to_ptr.vmem [resolvable:$true] %s270
      %273 = dma.vmem_to_hbm [thread:$0]  %s271, 32, %s3, [#allocation4]
    $region29: #{tpu_custom_call.1} parent=1 // pred_fallthru
      _
    // Predicated region
    $region30: #{tpu_custom_call.1} parent=1 // pred_check
      _
    $region31: #{tpu_custom_call.1} parent=1 // pred_check_branch
      %275 = sbr.rel (0) target = $region33
    $region32: #{tpu_custom_call.1} parent=1 // pred_region
      %276 = dma.done [#allocation4], 32
    $region33: #{tpu_custom_call.1} parent=1 // pred_fallthru
      _
    %277 = vsyncpa [#allocation3], 1
    %278 = vsyncpa [#allocation6], 1
    %279 = vsyncpa [#allocation4], 1

</llo_original>
